<compile_context>
chip_gen: v5e
topology: v5e:2x2
jax: 0.10.0
libtpu: 0.0.40
codegen_flags: <defaults>
</compile_context>

<pallas_src>
import functools

import jax
import jax.numpy as jnp
from jax.experimental import pallas as pl
from jax.experimental.pallas import tpu as pltpu


def _pick_spatial_tile(hw, cap=4096):
    """Largest spatial tile that divides hw, is a multiple of 128, and <= cap."""
    if hw <= cap:
        return hw
    best = None
    t = 128
    while t <= cap:
        if hw % t == 0:
            best = t
        t += 128
    return best if best is not None else hw


def _contrastive_kernel(n_half, inv_total, inv_view0, inv_view1,
                        x_ref, y_ref, w1_ref, b1_ref, w2_ref, b2_ref,
                        out_ref, loss_ref, con_ref,
                        loss_acc, z0_acc, z1_acc):
    """One (sample, spatial-tile) grid step.

    x_ref  : (1, C, S)    input tile           (lane axis = spatial)
    y_ref  : (1, 1, S)    label tile
    w1_ref : (Hid, C)     conv1 weight (transposed), constant block
    b1_ref : (Hid, 1)     conv1 bias, constant block
    w2_ref : (Hid, 1)     conv2 weight, constant block
    b2_ref : (1, 1)       conv2 bias (SMEM scalar)
    out_ref: (1, 1, S)    logits tile
    loss/con_ref: (1, 1)  scalar outputs, written only on the last step
    loss_acc: (1, 1) VMEM scratch — running sum of squared errors
    z0_acc/z1_acc: (Hid, 1) VMEM scratch — running per-view feature sums
    """
    n = pl.program_id(0)            # sample index
    s = pl.program_id(1)            # spatial tile index

    @pl.when(jnp.logical_and(n == 0, s == 0))
    def _init():
        loss_acc[...] = jnp.zeros_like(loss_acc)
        z0_acc[...] = jnp.zeros_like(z0_acc)
        z1_acc[...] = jnp.zeros_like(z1_acc)

    x = x_ref[0]                                                  # (C, S)

    # conv1 (1x1): (Hid, C) @ (C, S) -> (Hid, S), lane-dense in S, then ReLU.
    h = jnp.dot(w1_ref[...], x, preferred_element_type=jnp.float32)
    h = jnp.maximum(h + b1_ref[...], 0.0)                         # (Hid, S)

    # conv2 (Hid -> 1): VPU multiply + sublane reduce (lane-dense result).
    logits = jnp.sum(h * w2_ref[...], axis=0, keepdims=True) + b2_ref[0, 0]
    out_ref[...] = logits.reshape(out_ref.shape)                  # (1, 1, S)

    # MSE partial: accumulate sum of squared errors.
    diff = logits - y_ref[0]                                      # (1, S)
    loss_acc[...] += jnp.sum(diff * diff, keepdims=True)          # (1, 1)

    # Per-view pooled-feature partial: sum hidden features over spatial lanes.
    hsum = jnp.sum(h, axis=1, keepdims=True)                      # (Hid, 1)

    @pl.when(n < n_half)
    def _view0():
        z0_acc[...] += hsum

    @pl.when(n >= n_half)
    def _view1():
        z1_acc[...] += hsum

    is_last = jnp.logical_and(n == pl.num_programs(0) - 1,
                              s == pl.num_programs(1) - 1)

    @pl.when(is_last)
    def _finalize():
        loss_ref[...] = loss_acc[...] * inv_total
        z0 = z0_acc[...] * inv_view0                              # (Hid, 1)
        z1 = z1_acc[...] * inv_view1
        z0n = z0 * jax.lax.rsqrt(jnp.sum(z0 * z0) + 1e-8)
        z1n = z1 * jax.lax.rsqrt(jnp.sum(z1 * z1) + 1e-8)
        con_ref[...] = 1.0 - jnp.sum(z0n * z1n, keepdims=True)    # (1, 1)


def contrastive_full_model(inputs_nchw, labels_nchw, params):
    """Returns (loss[1], multiview_contrastive[1], outputs[N,1,H,W])."""
    w1, b1, w2, b2 = params          # w1 (C,Hid), b1 (1,Hid), w2 (Hid,1), b2 (1,1)
    N, C, H, W = inputs_nchw.shape
    HW = H * W
    hid = w1.shape[1]

    # Free reshapes of NCHW — no transposes, spatial axis goes on lanes.
    x3 = inputs_nchw.reshape(N, C, HW)
    y3 = labels_nchw.reshape(N, 1, HW)

    # Tiny weight re-layouts (negligible).
    w1t = jnp.transpose(w1)          # (Hid, C)
    b1c = b1.reshape(hid, 1)         # (Hid, 1)

    s_tile = _pick_spatial_tile(HW)
    num_tiles = HW // s_tile

    n_half = N // 2                                  # view 0 = samples [0, N//2)
    rows_v0 = max(n_half * HW, 1)
    rows_v1 = max((N - n_half) * HW, 1)

    kernel = functools.partial(
        _contrastive_kernel, n_half,
        1.0 / float(N * HW), 1.0 / float(rows_v0), 1.0 / float(rows_v1))

    out3, loss11, con11 = pl.pallas_call(
        kernel,
        out_shape=(
            jax.ShapeDtypeStruct((N, 1, HW), jnp.float32),
            jax.ShapeDtypeStruct((1, 1), jnp.float32),
            jax.ShapeDtypeStruct((1, 1), jnp.float32),
        ),
        grid_spec=pltpu.PrefetchScalarGridSpec(
            num_scalar_prefetch=0,
            grid=(N, num_tiles),
            in_specs=[
                pl.BlockSpec((1, C, s_tile), lambda n, s: (n, 0, s)),   # x
                pl.BlockSpec((1, 1, s_tile), lambda n, s: (n, 0, s)),   # y
                pl.BlockSpec((hid, C), lambda n, s: (0, 0)),            # w1^T
                pl.BlockSpec((hid, 1), lambda n, s: (0, 0)),            # b1
                pl.BlockSpec((hid, 1), lambda n, s: (0, 0)),            # w2
                pl.BlockSpec(memory_space=pltpu.MemorySpace.SMEM),      # b2
            ],
            out_specs=(
                pl.BlockSpec((1, 1, s_tile), lambda n, s: (n, 0, s)),   # logits
                pl.BlockSpec((1, 1), lambda n, s: (0, 0)),              # loss
                pl.BlockSpec((1, 1), lambda n, s: (0, 0)),              # contrastive
            ),
            scratch_shapes=[
                pltpu.VMEM((1, 1), jnp.float32),      # sum of squared errors
                pltpu.VMEM((hid, 1), jnp.float32),    # view-0 feature sum
                pltpu.VMEM((hid, 1), jnp.float32),    # view-1 feature sum
            ],
        ),
        compiler_params=pltpu.CompilerParams(
            dimension_semantics=("arbitrary", "arbitrary"),
            vmem_limit_bytes=32 * 1024 * 1024,
        ),
    )(x3, y3, w1t, b1c, w2, b2)

    outputs = out3.reshape(N, 1, H, W)     # 1-channel NCHW (free reshape)
    loss = loss11.reshape(1)               # torch.unsqueeze(loss, 0)
    contrastive = con11.reshape(1)         # torch.unsqueeze(contrastive, 0)
    return loss, contrastive, outputs


def init_params(key, c_in=4, hidden=32):
    k1, k2, k3, k4 = jax.random.split(key, 4)
    w1 = jax.random.normal(k1, (c_in, hidden), jnp.float32) * 0.1
    b1 = jax.random.normal(k2, (1, hidden), jnp.float32) * 0.01
    w2 = jax.random.normal(k3, (hidden, 1), jnp.float32) * 0.1
    b2 = jax.random.normal(k4, (1, 1), jnp.float32) * 0.01
    return w1, b1, w2, b2


def _reference(inputs, labels, params):
    """Pure-JAX reference for the same synthetic model / loss."""
    w1, b1, w2, b2 = params
    N, C, H, W = inputs.shape
    x = jnp.transpose(inputs, (0, 2, 3, 1)).reshape(-1, C)
    y = jnp.transpose(labels, (0, 2, 3, 1)).reshape(-1, 1)
    h = jnp.maximum(x @ w1 + b1, 0.0)
    logits = h @ w2 + b2
    loss = jnp.mean((logits - y) ** 2)
    rpv = (N // 2) * H * W
    z0 = jnp.mean(h[:rpv], axis=0)
    z1 = jnp.mean(h[rpv:], axis=0)
    z0n = z0 * jax.lax.rsqrt(jnp.sum(z0 * z0) + 1e-8)
    z1n = z1 * jax.lax.rsqrt(jnp.sum(z1 * z1) + 1e-8)
    con = 1.0 - jnp.sum(z0n * z1n)
    out = jnp.transpose(logits.reshape(N, H, W, 1), (0, 3, 1, 2))
    return loss.reshape(1), con.reshape(1), out


if __name__ == "__main__":
    key = jax.random.PRNGKey(0)
    kx, ky, kp = jax.random.split(key, 3)

    N, C, H, W = 2, 4, 16, 16
    inputs = jax.random.normal(kx, (N, C, H, W), jnp.float32)
    labels = jax.random.uniform(ky, (N, 1, H, W), jnp.float32)
    params = init_params(kp, c_in=C, hidden=32)

    # TODO(synk): the original wrapper accepts arbitrary `model`/`loss`
    # submodules; a fixed synthetic 1x1-conv model + MSE loss + cosine
    # contrastive head is instantiated here.
    loss, contrastive, outputs = jax.jit(contrastive_full_model)(inputs, labels, params)
    jax.block_until_ready((loss, contrastive, outputs))

    assert loss.shape == (1,)
    assert contrastive.shape == (1,)
    assert outputs.shape == (N, 1, H, W)

    ref_loss, ref_con, ref_out = _reference(inputs, labels, params)
    assert jnp.allclose(loss, ref_loss, rtol=5e-3, atol=5e-3)
    assert jnp.allclose(contrastive, ref_con, rtol=5e-3, atol=5e-3)
    assert jnp.allclose(outputs, ref_out, rtol=5e-3, atol=5e-3)

    print("KERNEL_OK")
</pallas_src>

<mosaic_0001>
module attributes {stable_mosaic.version = 11 : i64} {
  func.func @_contrastive_kernel(%arg0: i32, %arg1: i32, %arg2: memref<1x4x256xf32, #tpu.memory_space<vmem>>, %arg3: memref<1x1x256xf32, #tpu.memory_space<vmem>>, %arg4: memref<32x4xf32, #tpu.memory_space<vmem>>, %arg5: memref<32x1xf32, #tpu.memory_space<vmem>>, %arg6: memref<32x1xf32, #tpu.memory_space<vmem>>, %arg7: memref<1x1xf32, #tpu.memory_space<smem>>, %arg8: memref<1x1x256xf32, #tpu.memory_space<vmem>>, %arg9: memref<1x1xf32, #tpu.memory_space<vmem>>, %arg10: memref<1x1xf32, #tpu.memory_space<vmem>>, %arg11: memref<1x1xf32, #tpu.memory_space<vmem>>, %arg12: memref<32x1xf32, #tpu.memory_space<vmem>>, %arg13: memref<32x1xf32, #tpu.memory_space<vmem>>) attributes {dimension_semantics = [#tpu.dimension_semantics<arbitrary>, #tpu.dimension_semantics<arbitrary>], iteration_bounds = array<i64: 2, 1>, scalar_prefetch = 0 : i64, scratch_operands = 3 : i64, tpu.core_type = #tpu.core_type<tc>, window_params = [{transform_indices = @transform_0, window_bounds = array<i64: 1, 4, 256>}, {transform_indices = @transform_1, window_bounds = array<i64: 1, 1, 256>}, {pipeline_mode = #tpu.pipeline_mode<synchronous>, transform_indices = @transform_2, window_bounds = array<i64: 32, 4>}, {pipeline_mode = #tpu.pipeline_mode<synchronous>, transform_indices = @transform_3, window_bounds = array<i64: 32, 1>}, {pipeline_mode = #tpu.pipeline_mode<synchronous>, transform_indices = @transform_4, window_bounds = array<i64: 32, 1>}, {transform_indices = @transform_5, window_bounds = array<i64: 1, 1>}, {transform_indices = @transform_6, window_bounds = array<i64: 1, 1, 256>}, {pipeline_mode = #tpu.pipeline_mode<synchronous>, transform_indices = @transform_7, window_bounds = array<i64: 1, 1>}, {pipeline_mode = #tpu.pipeline_mode<synchronous>, transform_indices = @transform_8, window_bounds = array<i64: 1, 1>}]} {
    %c0_i32 = arith.constant 0 : i32
    %0 = arith.cmpi eq, %arg0, %c0_i32 : i32
    %c0_i32_0 = arith.constant 0 : i32
    %1 = arith.cmpi eq, %arg1, %c0_i32_0 : i32
    %2 = arith.andi %0, %1 : i1
    %3 = arith.extui %2 : i1 to i32
    %c0_i32_1 = arith.constant 0 : i32
    %4 = arith.cmpi ne, %3, %c0_i32_1 : i32
    scf.if %4 {
      %cst_32 = arith.constant 0.000000e+00 : f32
      %49 = vector.broadcast %cst_32 : f32 to vector<1x1xf32>
      %c0_33 = arith.constant 0 : index
      %c0_34 = arith.constant 0 : index
      %50 = vector.load %arg11[%c0_33, %c0_34] : memref<1x1xf32, #tpu.memory_space<vmem>>, vector<1x1xf32>
      tpu.vector_store %arg11[%c0_33, %c0_34], %49 {strides = array<i32>} : memref<1x1xf32, #tpu.memory_space<vmem>>, vector<1x1xf32>,
      %cst_35 = arith.constant 0.000000e+00 : f32
      %51 = vector.broadcast %cst_35 : f32 to vector<32x1xf32>
      %c0_36 = arith.constant 0 : index
      %c0_37 = arith.constant 0 : index
      %52 = vector.load %arg12[%c0_36, %c0_37] : memref<32x1xf32, #tpu.memory_space<vmem>>, vector<32x1xf32>
      tpu.vector_store %arg12[%c0_36, %c0_37], %51 {strides = array<i32>} : memref<32x1xf32, #tpu.memory_space<vmem>>, vector<32x1xf32>,
      %cst_38 = arith.constant 0.000000e+00 : f32
      %53 = vector.broadcast %cst_38 : f32 to vector<32x1xf32>
      %c0_39 = arith.constant 0 : index
      %c0_40 = arith.constant 0 : index
      %54 = vector.load %arg13[%c0_39, %c0_40] : memref<32x1xf32, #tpu.memory_space<vmem>>, vector<32x1xf32>
      tpu.vector_store %arg13[%c0_39, %c0_40], %53 {strides = array<i32>} : memref<32x1xf32, #tpu.memory_space<vmem>>, vector<32x1xf32>,
    } else {
    }
    %c0 = arith.constant 0 : index
    %c0_2 = arith.constant 0 : index
    %c0_3 = arith.constant 0 : index
    %5 = vector.load %arg2[%c0, %c0_2, %c0_3] : memref<1x4x256xf32, #tpu.memory_space<vmem>>, vector<1x4x256xf32>
    %6 = vector.shape_cast %5 : vector<1x4x256xf32> to vector<4x256xf32>
    %c0_4 = arith.constant 0 : index
    %c0_5 = arith.constant 0 : index
    %7 = vector.load %arg4[%c0_4, %c0_5] : memref<32x4xf32, #tpu.memory_space<vmem>>, vector<32x4xf32>
    %cst = arith.constant dense<0.000000e+00> : vector<32x256xf32>
    %8 = tpu.matmul %7, %6, %cst {dimension_numbers = #tpu.dot_dimension_numbers<[1], [0], [0], [1], [0, 0, 1, 1], [], []>} : vector<32x4xf32>, vector<4x256xf32>, vector<32x256xf32> -> vector<32x256xf32>
    %c0_6 = arith.constant 0 : index
    %c0_7 = arith.constant 0 : index
    %9 = vector.load %arg5[%c0_6, %c0_7] : memref<32x1xf32, #tpu.memory_space<vmem>>, vector<32x1xf32>
    %10 = vector.broadcast %9 : vector<32x1xf32> to vector<32x256xf32>
    %11 = arith.addf %8, %10 : vector<32x256xf32>
    %cst_8 = arith.constant 0.000000e+00 : f32
    %12 = vector.broadcast %cst_8 : f32 to vector<32x256xf32>
    %13 = arith.maximumf %11, %12 : vector<32x256xf32>
    %c0_9 = arith.constant 0 : index
    %c0_10 = arith.constant 0 : index
    %14 = vector.load %arg6[%c0_9, %c0_10] : memref<32x1xf32, #tpu.memory_space<vmem>>, vector<32x1xf32>
    %15 = vector.broadcast %14 : vector<32x1xf32> to vector<32x256xf32>
    %16 = arith.mulf %13, %15 : vector<32x256xf32>
    %cst_11 = arith.constant dense<0.000000e+00> : vector<256xf32>
    %17 = vector.multi_reduction <add>, %16, %cst_11 [0] : vector<32x256xf32> to vector<256xf32>
    %18 = vector.shape_cast %17 : vector<256xf32> to vector<1x256xf32>
    %c0_12 = arith.constant 0 : index
    %c0_13 = arith.constant 0 : index
    %19 = memref.load %arg7[%c0_12, %c0_13] : memref<1x1xf32, #tpu.memory_space<smem>>
    %20 = vector.broadcast %19 : f32 to vector<1x256xf32>
    %21 = arith.addf %18, %20 : vector<1x256xf32>
    %22 = vector.shape_cast %21 : vector<1x256xf32> to vector<1x1x256xf32>
    %c0_14 = arith.constant 0 : index
    %c0_15 = arith.constant 0 : index
    %c0_16 = arith.constant 0 : index
    %23 = vector.load %arg8[%c0_14, %c0_15, %c0_16] : memref<1x1x256xf32, #tpu.memory_space<vmem>>, vector<1x1x256xf32>
    tpu.vector_store %arg8[%c0_14, %c0_15, %c0_16], %22 {strides = array<i32>} : memref<1x1x256xf32, #tpu.memory_space<vmem>>, vector<1x1x256xf32>,
    %c0_17 = arith.constant 0 : index
    %c0_18 = arith.constant 0 : index
    %c0_19 = arith.constant 0 : index
    %24 = vector.load %arg3[%c0_17, %c0_18, %c0_19] : memref<1x1x256xf32, #tpu.memory_space<vmem>>, vector<1x1x256xf32>
    %25 = vector.shape_cast %24 : vector<1x1x256xf32> to vector<1x256xf32>
    %26 = arith.subf %21, %25 : vector<1x256xf32>
    %c0_20 = arith.constant 0 : index
    %c0_21 = arith.constant 0 : index
    %27 = vector.load %arg11[%c0_20, %c0_21] : memref<1x1xf32, #tpu.memory_space<vmem>>, vector<1x1xf32>
    %28 = arith.mulf %26, %26 : vector<1x256xf32>
    %29 = vector.shape_cast %28 : vector<1x256xf32> to vector<1x1x256xf32>
    %cst_22 = arith.constant dense<0.000000e+00> : vector<1xf32>
    %30 = vector.multi_reduction <add>, %29, %cst_22 [1, 2] : vector<1x1x256xf32> to vector<1xf32>
    %31 = vector.shape_cast %30 : vector<1xf32> to vector<1x1x1xf32>
    %32 = vector.extract %31[0, 0, 0] : f32 from vector<1x1x1xf32>
    %33 = vector.broadcast %32 : f32 to vector<1x1xf32>
    %34 = arith.addf %27, %33 : vector<1x1xf32>
    %c0_23 = arith.constant 0 : index
    %c0_24 = arith.constant 0 : index
    %35 = vector.load %arg11[%c0_23, %c0_24] : memref<1x1xf32, #tpu.memory_space<vmem>>, vector<1x1xf32>
    tpu.vector_store %arg11[%c0_23, %c0_24], %34 {strides = array<i32>} : memref<1x1xf32, #tpu.memory_space<vmem>>, vector<1x1xf32>,
    %cst_25 = arith.constant dense<0.000000e+00> : vector<32xf32>
    %36 = vector.multi_reduction <add>, %13, %cst_25 [1] : vector<32x256xf32> to vector<32xf32>
    %37 = vector.shape_cast %36 : vector<32xf32> to vector<32x1xf32>
    %c1_i32 = arith.constant 1 : i32
    %38 = arith.cmpi slt, %arg0, %c1_i32 : i32
    %39 = arith.extui %38 : i1 to i32
    %c0_i32_26 = arith.constant 0 : i32
    %40 = arith.cmpi ne, %39, %c0_i32_26 : i32
    scf.if %40 {
      %c0_32 = arith.constant 0 : index
      %c0_33 = arith.constant 0 : index
      %49 = vector.load %arg12[%c0_32, %c0_33] : memref<32x1xf32, #tpu.memory_space<vmem>>, vector<32x1xf32>
      %50 = arith.addf %49, %37 : vector<32x1xf32>
      %c0_34 = arith.constant 0 : index
      %c0_35 = arith.constant 0 : index
      %51 = vector.load %arg12[%c0_34, %c0_35] : memref<32x1xf32, #tpu.memory_space<vmem>>, vector<32x1xf32>
      tpu.vector_store %arg12[%c0_34, %c0_35], %50 {strides = array<i32>} : memref<32x1xf32, #tpu.memory_space<vmem>>, vector<32x1xf32>,
    } else {
    }
    %c1_i32_27 = arith.constant 1 : i32
    %41 = arith.cmpi sge, %arg0, %c1_i32_27 : i32
    %42 = arith.extui %41 : i1 to i32
    %c0_i32_28 = arith.constant 0 : i32
    %43 = arith.cmpi ne, %42, %c0_i32_28 : i32
    scf.if %43 {
      %c0_32 = arith.constant 0 : index
      %c0_33 = arith.constant 0 : index
      %49 = vector.load %arg13[%c0_32, %c0_33] : memref<32x1xf32, #tpu.memory_space<vmem>>, vector<32x1xf32>
      %50 = arith.addf %49, %37 : vector<32x1xf32>
      %c0_34 = arith.constant 0 : index
      %c0_35 = arith.constant 0 : index
      %51 = vector.load %arg13[%c0_34, %c0_35] : memref<32x1xf32, #tpu.memory_space<vmem>>, vector<32x1xf32>
      tpu.vector_store %arg13[%c0_34, %c0_35], %50 {strides = array<i32>} : memref<32x1xf32, #tpu.memory_space<vmem>>, vector<32x1xf32>,
    } else {
    }
    %c1_i32_29 = arith.constant 1 : i32
    %44 = arith.cmpi eq, %arg0, %c1_i32_29 : i32
    %c0_i32_30 = arith.constant 0 : i32
    %45 = arith.cmpi eq, %arg1, %c0_i32_30 : i32
    %46 = arith.andi %44, %45 : i1
    %47 = arith.extui %46 : i1 to i32
    %c0_i32_31 = arith.constant 0 : i32
    %48 = arith.cmpi ne, %47, %c0_i32_31 : i32
    scf.if %48 {
      %c0_32 = arith.constant 0 : index
      %c0_33 = arith.constant 0 : index
      %49 = vector.load %arg11[%c0_32, %c0_33] : memref<1x1xf32, #tpu.memory_space<vmem>>, vector<1x1xf32>
      %cst_34 = arith.constant 0.001953125 : f32
      %50 = vector.broadcast %cst_34 : f32 to vector<1x1xf32>
      %51 = arith.mulf %49, %50 : vector<1x1xf32>
      %c0_35 = arith.constant 0 : index
      %c0_36 = arith.constant 0 : index
      %52 = vector.load %arg9[%c0_35, %c0_36] : memref<1x1xf32, #tpu.memory_space<vmem>>, vector<1x1xf32>
      tpu.vector_store %arg9[%c0_35, %c0_36], %51 {strides = array<i32>} : memref<1x1xf32, #tpu.memory_space<vmem>>, vector<1x1xf32>,
      %c0_37 = arith.constant 0 : index
      %c0_38 = arith.constant 0 : index
      %53 = vector.load %arg12[%c0_37, %c0_38] : memref<32x1xf32, #tpu.memory_space<vmem>>, vector<32x1xf32>
      %cst_39 = arith.constant 3.906250e-03 : f32
      %54 = vector.broadcast %cst_39 : f32 to vector<32x1xf32>
      %55 = arith.mulf %53, %54 : vector<32x1xf32>
      %c0_40 = arith.constant 0 : index
      %c0_41 = arith.constant 0 : index
      %56 = vector.load %arg13[%c0_40, %c0_41] : memref<32x1xf32, #tpu.memory_space<vmem>>, vector<32x1xf32>
      %cst_42 = arith.constant 3.906250e-03 : f32
      %57 = vector.broadcast %cst_42 : f32 to vector<32x1xf32>
      %58 = arith.mulf %56, %57 : vector<32x1xf32>
      %59 = arith.mulf %55, %55 : vector<32x1xf32>
      %60 = vector.shape_cast %59 : vector<32x1xf32> to vector<1x32x1xf32>
      %cst_43 = arith.constant dense<0.000000e+00> : vector<1xf32>
      %61 = vector.multi_reduction <add>, %60, %cst_43 [1, 2] : vector<1x32x1xf32> to vector<1xf32>
      %62 = vector.shape_cast %61 : vector<1xf32> to vector<1x1x1xf32>
      %63 = vector.extract %62[0, 0, 0] : f32 from vector<1x1x1xf32>
      %cst_44 = arith.constant 9.99999993E-9 : f32
      %64 = arith.addf %63, %cst_44 : f32
      %65 = math.rsqrt %64 : f32
      %66 = vector.broadcast %65 : f32 to vector<32x1xf32>
      %67 = arith.mulf %55, %66 : vector<32x1xf32>
      %68 = arith.mulf %58, %58 : vector<32x1xf32>
      %69 = vector.shape_cast %68 : vector<32x1xf32> to vector<1x32x1xf32>
      %cst_45 = arith.constant dense<0.000000e+00> : vector<1xf32>
      %70 = vector.multi_reduction <add>, %69, %cst_45 [1, 2] : vector<1x32x1xf32> to vector<1xf32>
      %71 = vector.shape_cast %70 : vector<1xf32> to vector<1x1x1xf32>
      %72 = vector.extract %71[0, 0, 0] : f32 from vector<1x1x1xf32>
      %cst_46 = arith.constant 9.99999993E-9 : f32
      %73 = arith.addf %72, %cst_46 : f32
      %74 = math.rsqrt %73 : f32
      %75 = vector.broadcast %74 : f32 to vector<32x1xf32>
      %76 = arith.mulf %58, %75 : vector<32x1xf32>
      %77 = arith.mulf %67, %76 : vector<32x1xf32>
      %78 = vector.shape_cast %77 : vector<32x1xf32> to vector<1x32x1xf32>
      %cst_47 = arith.constant dense<0.000000e+00> : vector<1xf32>
      %79 = vector.multi_reduction <add>, %78, %cst_47 [1, 2] : vector<1x32x1xf32> to vector<1xf32>
      %80 = vector.shape_cast %79 : vector<1xf32> to vector<1x1x1xf32>
      %81 = vector.extract %80[0, 0, 0] : f32 from vector<1x1x1xf32>
      %82 = vector.broadcast %81 : f32 to vector<1x1xf32>
      %cst_48 = arith.constant 1.000000e+00 : f32
      %83 = vector.broadcast %cst_48 : f32 to vector<1x1xf32>
      %84 = arith.subf %83, %82 : vector<1x1xf32>
      %c0_49 = arith.constant 0 : index
      %c0_50 = arith.constant 0 : index
      %85 = vector.load %arg10[%c0_49, %c0_50] : memref<1x1xf32, #tpu.memory_space<vmem>>, vector<1x1xf32>
      tpu.vector_store %arg10[%c0_49, %c0_50], %84 {strides = array<i32>} : memref<1x1xf32, #tpu.memory_space<vmem>>, vector<1x1xf32>,
    } else {
    }
    return
  }
  func.func @transform_0(%arg0: i32, %arg1: i32) -> (i32, i32, i32) {
    %c0_i32 = arith.constant 0 : i32
    %c0_i32_0 = arith.constant 0 : i32
    return %arg0, %c0_i32, %arg1 : i32, i32, i32
  }
  func.func @transform_1(%arg0: i32, %arg1: i32) -> (i32, i32, i32) {
    %c0_i32 = arith.constant 0 : i32
    %c0_i32_0 = arith.constant 0 : i32
    return %arg0, %c0_i32, %arg1 : i32, i32, i32
  }
  func.func @transform_2(%arg0: i32, %arg1: i32) -> (i32, i32) {
    %c0_i32 = arith.constant 0 : i32
    %c0_i32_0 = arith.constant 0 : i32
    %c0_i32_1 = arith.constant 0 : i32
    return %c0_i32, %c0_i32_0 : i32, i32
  }
  func.func @transform_3(%arg0: i32, %arg1: i32) -> (i32, i32) {
    %c0_i32 = arith.constant 0 : i32
    %c0_i32_0 = arith.constant 0 : i32
    %c0_i32_1 = arith.constant 0 : i32
    return %c0_i32, %c0_i32_0 : i32, i32
  }
  func.func @transform_4(%arg0: i32, %arg1: i32) -> (i32, i32) {
    %c0_i32 = arith.constant 0 : i32
    %c0_i32_0 = arith.constant 0 : i32
    %c0_i32_1 = arith.constant 0 : i32
    return %c0_i32, %c0_i32_0 : i32, i32
  }
  func.func @transform_5(%arg0: i32, %arg1: i32) -> (i32, i32) {
    %c0_i32 = arith.constant 0 : i32
    %c0_i32_0 = arith.constant 0 : i32
    %c0_i32_1 = arith.constant 0 : i32
    return %c0_i32, %c0_i32_0 : i32, i32
  }
  func.func @transform_6(%arg0: i32, %arg1: i32) -> (i32, i32, i32) {
    %c0_i32 = arith.constant 0 : i32
    %c0_i32_0 = arith.constant 0 : i32
    return %arg0, %c0_i32, %arg1 : i32, i32, i32
  }
  func.func @transform_7(%arg0: i32, %arg1: i32) -> (i32, i32) {
    %c0_i32 = arith.constant 0 : i32
    %c0_i32_0 = arith.constant 0 : i32
    %c0_i32_1 = arith.constant 0 : i32
    return %c0_i32, %c0_i32_0 : i32, i32
  }
  func.func @transform_8(%arg0: i32, %arg1: i32) -> (i32, i32) {
    %c0_i32 = arith.constant 0 : i32
    %c0_i32_0 = arith.constant 0 : i32
    %c0_i32_1 = arith.constant 0 : i32
    return %c0_i32, %c0_i32_0 : i32, i32
  }
}

</mosaic_0001>

<llo_original>
// kernel: contrastive_full_model.1
$region0: #{contrastive_full_model.1}
  #allocation0 [shape = 'u32[]', space=smem, size = 0x4, offset = 0x4, fixed_abs, tag = 'smem constant byte address 0x4 - core index']
  #allocation1 [shape = 'u32[72,128]{1,0:T(1,128)}', space=vmem, size = 0x9000, scoped, tag = 'internal scratch']
  #allocation2 [shape = 'f32[1,1]{1,0:T(1,128)}', space=vmem, size = 0x200, scoped, tag = 'scratch operand']
  #allocation3 [shape = 'f32[32,1]{1,0:T(8,128)}', space=vmem, size = 0x4000, scoped, tag = 'scratch operand']
  #allocation4 [shape = 'f32[32,1]{1,0:T(8,128)}', space=vmem, size = 0x4000, scoped, tag = 'scratch operand']
  #allocation5 [shape = 'f32[1,1]{1,0:T(1,128)S(6)}', space=smem, size = 0x200, scoped, tag = 'scoped memory for contrastive_full_model.1']
  %s0 = inlined_call_operand.vmem [shape: f32[2,4,256], index: 0, kind: input, shape index: {}]
  %s1 = inlined_call_operand.vmem [shape: f32[2,1,256], index: 1, kind: input, shape index: {}]
  %s2 = inlined_call_operand.vmem [shape: f32[32,4], index: 2, kind: input, shape index: {}]
  %s3 = inlined_call_operand.vmem [shape: f32[32,1], index: 3, kind: input, shape index: {}]
  %s4 = inlined_call_operand.vmem [shape: f32[32,1], index: 4, kind: input, shape index: {}]
  %s5 = inlined_call_operand.<no memory space> [shape: f32[1,1], index: 5, kind: input, shape index: {}]
  %s6 = inlined_call_operand.vmem [shape: f32[2,1,256], index: 6, kind: output, shape index: {0}]
  %s7 = inlined_call_operand.hbm [shape: f32[1,1], index: 7, kind: output, shape index: {1}]
  %s8 = inlined_call_operand.hbm [shape: f32[1,1], index: 8, kind: output, shape index: {2}]
  %9 = xla_tuple %s6, %s7, %s8
  %s10 = sld [smem:[#allocation0]]
  $region89: #{contrastive_full_model.1} parent=0
    _
  %s12 = ssub.s32 1, %s10
  %s13 = scalar_select 0, %s12, %s10
  %14 = sst [smem:[#allocation5]] %s5
  $region1: #{contrastive_full_model.1} parent=0
    #allocation6 [shape = 'u8[512]{0}', space=vmem, size = 0x400, scoped, tag = 'output window, operand 1, single buffered']
    #allocation7 [shape = 's32[2]{0}', space=sflag, size = 0x8, scoped, tag = 'scoped memory for contrastive_full_model.1']
    #allocation8 [shape = 'u8[512]{0}', space=vmem, size = 0x400, scoped, tag = 'output window, operand 2, single buffered']
    #allocation9 [shape = 's32[1]{0}', space=sflag, size = 0x4, scoped, tag = 'scoped memory for contrastive_full_model.1']
    %15 = vsyncpa [#allocation7], 0
    %16 = vsyncpa [#allocation9], 0
    loop: start=0, step=1, limit=4
    $region2: #{contrastive_full_model.1} parent=1 // loop_pre_header
      _
    $region3: #{contrastive_full_model.1} parent=1 // loop_header
      %s18 = sphi 0, %s22
      %p19 = scmp.ge.s32.totalorder %s18, 4
      %s25 = sphi 0, %s37
      %s26 = sphi 0, %s33
      %s27 = sphi 0, %s25
      %s28 = sphi 0, %s26
      %s29 = sphi 0, %s27
      %s30 = sphi 0, %s28
      %s42 = sphi 0, %s44
      %s45 = sphi 0, %s42
      %s46 = sphi 0, %s45
      %s62 = sphi 0, %s46
      %s70 = sphi 0, %s72
      %s73 = sphi 0, %s70
      %s74 = sphi 0, %s73
      %s90 = sphi 0, %s74
      %s94 = sphi 0, %s94
      %s96 = sphi 0, %s94
      %s97 = sphi 0, %s96
      %s111 = sphi 0, %s97
      %s115 = sphi 0, %s115
      %s117 = sphi 0, %s115
      %s118 = sphi 0, %s117
      %s132 = sphi 0, %s118
      %s136 = sphi 0, %s136
      %s138 = sphi 0, %s136
      %s139 = sphi 0, %s138
      %s153 = sphi 0, %s139
      %s157 = sphi 0, %s157
      %s159 = sphi 0, %s157
      %s160 = sphi 0, %s159
      %s174 = sphi 0, %s160
      %s182 = sphi 0, %s184
      %s185 = sphi 0, %s182
      %s186 = sphi 0, %s185
      %s202 = sphi 0, %s186
      %s206 = sphi 0, %s206
      %s208 = sphi 0, %s206
      %s209 = sphi 0, %s208
      %s223 = sphi 0, %s209
      %s227 = sphi 0, %s227
      %s229 = sphi 0, %s227
      %s230 = sphi 0, %s229
      %s244 = sphi 0, %s230
    $region4: #{contrastive_full_model.1} parent=1 // loop_header_branch
      %21 = sbr.rel (%p19) target = $region8
    $region5: #{contrastive_full_model.1} parent=1 // loop_body
      %s23 = ssub.s32 %s18, 1
      %s24 = ssub.s32 %s18, 2
      %s31 = sadd.s32 1, %s26
      %p32 = scmp.ge.s32.totalorder %s31, 1
      %s33 = scalar_select %p32, 0, %s31
      %s34 = sadd.s32 1, %s25
      %s35 = scalar_select %p32, %s34, %s25
      %p36 = scmp.ge.s32.totalorder %s35, 2
      %s37 = scalar_select %p36, 0, %s35
      %s38 = ssub.s32 %s25, %s37
      %s39 = ssub.s32 %s26, %s33
      %s40 = sor.u32 %s38, %s39
      %p41 = scmp.eq.s32.totalorder %s40, 0
      %s43 = sadd.s32 %s42, 1
      %s44 = scalar_select %p41, %s42, %s43
      %p47 = pneg %p41
      %p48 = scmp.eq.s32.totalorder %s18, 1
      %p49 = por %p47, %p48
      %p50 = scmp.ne.s32.totalorder %s42, %s45
      %p51 = scmp.eq.s32.totalorder %s18, 0
      %p52 = por %p50, %p51
      %p53 = scmp.ne.s32.totalorder %s42, %s45
      %p54 = scmp.eq.s32.totalorder %s23, 1
      %p55 = por %p53, %p54
      %p56 = scmp.ne.s32.totalorder %s45, %s46
      %p57 = scmp.eq.s32.totalorder %s23, 0
      %p58 = por %p56, %p57
      %p59 = scmp.ne.s32.totalorder %s45, %s46
      %p60 = scmp.eq.s32.totalorder %s24, 1
      %p61 = por %p59, %p60
      %p63 = scmp.ne.s32.totalorder %s46, %s62
      %p64 = scmp.eq.s32.totalorder %s24, 0
      %p65 = por %p63, %p64
      %s66 = ssub.s32 %s25, %s37
      %s67 = ssub.s32 %s26, %s33
      %s68 = sor.u32 %s66, %s67
      %p69 = scmp.eq.s32.totalorder %s68, 0
      %s71 = sadd.s32 %s70, 1
      %s72 = scalar_select %p69, %s70, %s71
      %p75 = pneg %p69
      %p76 = scmp.eq.s32.totalorder %s18, 1
      %p77 = por %p75, %p76
      %p78 = scmp.ne.s32.totalorder %s70, %s73
      %p79 = scmp.eq.s32.totalorder %s18, 0
      %p80 = por %p78, %p79
      %p81 = scmp.ne.s32.totalorder %s70, %s73
      %p82 = scmp.eq.s32.totalorder %s23, 1
      %p83 = por %p81, %p82
      %p84 = scmp.ne.s32.totalorder %s73, %s74
      %p85 = scmp.eq.s32.totalorder %s23, 0
      %p86 = por %p84, %p85
      %p87 = scmp.ne.s32.totalorder %s73, %s74
      %p88 = scmp.eq.s32.totalorder %s24, 1
      %p89 = por %p87, %p88
      %p91 = scmp.ne.s32.totalorder %s74, %s90
      %p92 = scmp.eq.s32.totalorder %s24, 0
      %p93 = por %p91, %p92
      %s95 = sadd.s32 %s94, 1
      %p98 = scmp.eq.s32.totalorder %s18, 1
      %p99 = scmp.ne.s32.totalorder %s94, %s96
      %p100 = scmp.eq.s32.totalorder %s18, 0
      %p101 = por %p99, %p100
      %p102 = scmp.ne.s32.totalorder %s94, %s96
      %p103 = scmp.eq.s32.totalorder %s23, 1
      %p104 = por %p102, %p103
      %p105 = scmp.ne.s32.totalorder %s96, %s97
      %p106 = scmp.eq.s32.totalorder %s23, 0
      %p107 = por %p105, %p106
      %p108 = scmp.ne.s32.totalorder %s96, %s97
      %p109 = scmp.eq.s32.totalorder %s24, 1
      %p110 = por %p108, %p109
      %p112 = scmp.ne.s32.totalorder %s97, %s111
      %p113 = scmp.eq.s32.totalorder %s24, 0
      %p114 = por %p112, %p113
      %s116 = sadd.s32 %s115, 1
      %p119 = scmp.eq.s32.totalorder %s18, 1
      %p120 = scmp.ne.s32.totalorder %s115, %s117
      %p121 = scmp.eq.s32.totalorder %s18, 0
      %p122 = por %p120, %p121
      %p123 = scmp.ne.s32.totalorder %s115, %s117
      %p124 = scmp.eq.s32.totalorder %s23, 1
      %p125 = por %p123, %p124
      %p126 = scmp.ne.s32.totalorder %s117, %s118
      %p127 = scmp.eq.s32.totalorder %s23, 0
      %p128 = por %p126, %p127
      %p129 = scmp.ne.s32.totalorder %s117, %s118
      %p130 = scmp.eq.s32.totalorder %s24, 1
      %p131 = por %p129, %p130
      %p133 = scmp.ne.s32.totalorder %s118, %s132
      %p134 = scmp.eq.s32.totalorder %s24, 0
      %p135 = por %p133, %p134
      %s137 = sadd.s32 %s136, 1
      %p140 = scmp.eq.s32.totalorder %s18, 1
      %p141 = scmp.ne.s32.totalorder %s136, %s138
      %p142 = scmp.eq.s32.totalorder %s18, 0
      %p143 = por %p141, %p142
      %p144 = scmp.ne.s32.totalorder %s136, %s138
      %p145 = scmp.eq.s32.totalorder %s23, 1
      %p146 = por %p144, %p145
      %p147 = scmp.ne.s32.totalorder %s138, %s139
      %p148 = scmp.eq.s32.totalorder %s23, 0
      %p149 = por %p147, %p148
      %p150 = scmp.ne.s32.totalorder %s138, %s139
      %p151 = scmp.eq.s32.totalorder %s24, 1
      %p152 = por %p150, %p151
      %p154 = scmp.ne.s32.totalorder %s139, %s153
      %p155 = scmp.eq.s32.totalorder %s24, 0
      %p156 = por %p154, %p155
      %s158 = sadd.s32 %s157, 1
      %p161 = scmp.eq.s32.totalorder %s18, 1
      %p162 = scmp.ne.s32.totalorder %s157, %s159
      %p163 = scmp.eq.s32.totalorder %s18, 0
      %p164 = por %p162, %p163
      %p165 = scmp.ne.s32.totalorder %s157, %s159
      %p166 = scmp.eq.s32.totalorder %s23, 1
      %p167 = por %p165, %p166
      %p168 = scmp.ne.s32.totalorder %s159, %s160
      %p169 = scmp.eq.s32.totalorder %s23, 0
      %p170 = por %p168, %p169
      %p171 = scmp.ne.s32.totalorder %s159, %s160
      %p172 = scmp.eq.s32.totalorder %s24, 1
      %p173 = por %p171, %p172
      %p175 = scmp.ne.s32.totalorder %s160, %s174
      %p176 = scmp.eq.s32.totalorder %s24, 0
      %p177 = por %p175, %p176
      %s178 = ssub.s32 %s25, %s37
      %s179 = ssub.s32 %s26, %s33
      %s180 = sor.u32 %s178, %s179
      %p181 = scmp.eq.s32.totalorder %s180, 0
      %s183 = sadd.s32 %s182, 1
      %s184 = scalar_select %p181, %s182, %s183
      %p187 = pneg %p181
      %p188 = scmp.eq.s32.totalorder %s18, 1
      %p189 = por %p187, %p188
      %p190 = scmp.ne.s32.totalorder %s182, %s185
      %p191 = scmp.eq.s32.totalorder %s18, 0
      %p192 = por %p190, %p191
      %p193 = scmp.ne.s32.totalorder %s182, %s185
      %p194 = scmp.eq.s32.totalorder %s23, 1
      %p195 = por %p193, %p194
      %p196 = scmp.ne.s32.totalorder %s185, %s186
      %p197 = scmp.eq.s32.totalorder %s23, 0
      %p198 = por %p196, %p197
      %p199 = scmp.ne.s32.totalorder %s185, %s186
      %p200 = scmp.eq.s32.totalorder %s24, 1
      %p201 = por %p199, %p200
      %p203 = scmp.ne.s32.totalorder %s186, %s202
      %p204 = scmp.eq.s32.totalorder %s24, 0
      %p205 = por %p203, %p204
      %s207 = sadd.s32 %s206, 1
      %p210 = scmp.eq.s32.totalorder %s18, 1
      %p211 = scmp.ne.s32.totalorder %s206, %s208
      %p212 = scmp.eq.s32.totalorder %s18, 0
      %p213 = por %p211, %p212
      %p214 = scmp.ne.s32.totalorder %s206, %s208
      %p215 = scmp.eq.s32.totalorder %s23, 1
      %p216 = por %p214, %p215
      %p217 = scmp.ne.s32.totalorder %s208, %s209
      %p218 = scmp.eq.s32.totalorder %s23, 0
      %p219 = por %p217, %p218
      %p220 = scmp.ne.s32.totalorder %s208, %s209
      %p221 = scmp.eq.s32.totalorder %s24, 1
      %p222 = por %p220, %p221
      %p224 = scmp.ne.s32.totalorder %s209, %s223
      %p225 = scmp.eq.s32.totalorder %s24, 0
      %p226 = por %p224, %p225
      %s228 = sadd.s32 %s227, 1
      %p231 = scmp.eq.s32.totalorder %s18, 1
      %p232 = scmp.ne.s32.totalorder %s227, %s229
      %p233 = scmp.eq.s32.totalorder %s18, 0
      %p234 = por %p232, %p233
      %p235 = scmp.ne.s32.totalorder %s227, %s229
      %p236 = scmp.eq.s32.totalorder %s23, 1
      %p237 = por %p235, %p236
      %p238 = scmp.ne.s32.totalorder %s229, %s230
      %p239 = scmp.eq.s32.totalorder %s23, 0
      %p240 = por %p238, %p239
      %p241 = scmp.ne.s32.totalorder %s229, %s230
      %p242 = scmp.eq.s32.totalorder %s24, 1
      %p243 = por %p241, %p242
      %p245 = scmp.ne.s32.totalorder %s230, %s244
      %p246 = scmp.eq.s32.totalorder %s24, 0
      %p247 = por %p245, %p246
      %p248 = scmp.le.s32.totalorder 1, %s18
      %p249 = scmp.lt.s32.totalorder %s18, 3
      %p250 = pnand %p248, %p249
      %p251 = pneg %p250
      // Predicated region
      $region9: #{contrastive_full_model.1} parent=5 // pred_check
        _
      $region10: #{contrastive_full_model.1} parent=5 // pred_check_branch
        %253 = sbr.rel (%p250) target = $region12
      $region11: #{contrastive_full_model.1} parent=5 // pred_region
        %s254 = ssub.s32 %s18, 1
        // Predicated region
        $region13: #{contrastive_full_model.1} parent=11 // pred_check
          %p255 = pneg %p107
        $region14: #{contrastive_full_model.1} parent=11 // pred_check_branch
          %257 = sbr.rel (%p255) target = $region16
        $region15: #{contrastive_full_model.1} parent=11 // pred_region
          _
        $region16: #{contrastive_full_model.1} parent=11 // pred_fallthru
          _
        // Predicated region
        $region17: #{contrastive_full_model.1} parent=11 // pred_check
          %p258 = pneg %p128
        $region18: #{contrastive_full_model.1} parent=11 // pred_check_branch
          %260 = sbr.rel (%p258) target = $region20
        $region19: #{contrastive_full_model.1} parent=11 // pred_region
          _
        $region20: #{contrastive_full_model.1} parent=11 // pred_fallthru
          _
        // Predicated region
        $region21: #{contrastive_full_model.1} parent=11 // pred_check
          %p261 = pneg %p149
        $region22: #{contrastive_full_model.1} parent=11 // pred_check_branch
          %263 = sbr.rel (%p261) target = $region24
        $region23: #{contrastive_full_model.1} parent=11 // pred_region
          _
        $region24: #{contrastive_full_model.1} parent=11 // pred_fallthru
          _
        // Predicated region
        $region25: #{contrastive_full_model.1} parent=11 // pred_check
          %p264 = pneg %p170
        $region26: #{contrastive_full_model.1} parent=11 // pred_check_branch
          %266 = sbr.rel (%p264) target = $region28
        $region27: #{contrastive_full_model.1} parent=11 // pred_region
          _
        $region28: #{contrastive_full_model.1} parent=11 // pred_fallthru
          _
      $region12: #{contrastive_full_model.1} parent=5 // pred_fallthru
        _
      %p267 = scmp.lt.s32.totalorder %s18, 2
      // Predicated region
      $region29: #{contrastive_full_model.1} parent=5 // pred_check
        %p268 = pneg %p267
      $region30: #{contrastive_full_model.1} parent=5 // pred_check_branch
        %270 = sbr.rel (%p268) target = $region32
      $region31: #{contrastive_full_model.1} parent=5 // pred_region
        // Predicated region
        $region33: #{contrastive_full_model.1} parent=31 // pred_check
          %p271 = pneg %p52
        $region34: #{contrastive_full_model.1} parent=31 // pred_check_branch
          %273 = sbr.rel (%p271) target = $region36
        $region35: #{contrastive_full_model.1} parent=31 // pred_region
          %s274 = smul.u32 2, %s26
          %p275 = scmp.lt.s32.totalorder %s25, 1
          %s276 = scalar_select %p275, %s25, 1
          %p277 = scmp.lt.s32.totalorder %s274, 1
          %s278 = scalar_select %p277, %s274, 1
          %s279 = smul.addr %s276, 2
          %s280 = sadd.s32 %s278, %s279
          %s281 = smul.addr %s280, 4
          %s282 = scalar_lea.vmem %s0, %s281
          %s283 = smul.u32 2, %s26
        $region36: #{contrastive_full_model.1} parent=31 // pred_fallthru
          _
        // Predicated region
        $region37: #{contrastive_full_model.1} parent=31 // pred_check
          %p284 = pneg %p80
        $region38: #{contrastive_full_model.1} parent=31 // pred_check_branch
          %286 = sbr.rel (%p284) target = $region40
        $region39: #{contrastive_full_model.1} parent=31 // pred_region
          %s287 = smul.u32 2, %s26
          %p288 = scmp.lt.s32.totalorder %s25, 1
          %s289 = scalar_select %p288, %s25, 1
          %p290 = scmp.lt.s32.totalorder %s287, 1
          %s291 = scalar_select %p290, %s287, 1
          %s292 = smul.addr %s289, 2
          %s293 = sadd.s32 %s291, %s292
          %s294 = scalar_lea.vmem %s1, %s293
          %s295 = smul.u32 2, %s26
        $region40: #{contrastive_full_model.1} parent=31 // pred_fallthru
          _
      $region32: #{contrastive_full_model.1} parent=5 // pred_fallthru
        _
      %p296 = scmp.le.s32.totalorder 1, %s18
      %p297 = scmp.lt.s32.totalorder %s18, 3
      %p298 = pnand %p296, %p297
      %p299 = pneg %p298
      // Predicated region
      $region41: #{contrastive_full_model.1} parent=5 // pred_check
        _
      $region42: #{contrastive_full_model.1} parent=5 // pred_check_branch
        %301 = sbr.rel (%p298) target = $region44
      $region43: #{contrastive_full_model.1} parent=5 // pred_region
        %s302 = ssub.s32 %s18, 1
        %s303 = smul.u32 2, %s28
        %p304 = scmp.lt.s32.totalorder %s27, 1
        %s305 = scalar_select %p304, %s27, 1
        %p306 = scmp.lt.s32.totalorder %s303, 1
        %s307 = scalar_select %p306, %s303, 1
        %s308 = smul.addr %s305, 2
        %s309 = sadd.s32 %s307, %s308
        %s310 = smul.addr %s309, 4
        %s311 = scalar_lea.vmem %s0, %s310
        %p312 = pneg %p58
        %p313 = pneg %p55
        %s314 = smul.u32 2, %s28
        %p315 = scmp.lt.s32.totalorder %s27, 1
        %s316 = scalar_select %p315, %s27, 1
        %p317 = scmp.lt.s32.totalorder %s314, 1
        %s318 = scalar_select %p317, %s314, 1
        %s319 = smul.addr %s316, 2
        %s320 = sadd.s32 %s318, %s319
        %s321 = scalar_lea.vmem %s1, %s320
        %p322 = pneg %p86
        %p323 = pneg %p83
        %p324 = pneg %p107
        %p325 = pneg %p104
        %p326 = pneg %p128
        %p327 = pneg %p125
        %p328 = pneg %p149
        %p329 = pneg %p146
        %p330 = pneg %p170
        %p331 = pneg %p167
        %p332 = pneg %p198
        %p333 = pneg %p195
        %s334 = smul.u32 2, %s28
        %p335 = scmp.lt.s32.totalorder %s27, 1
        %s336 = scalar_select %p335, %s27, 1
        %p337 = scmp.lt.s32.totalorder %s334, 1
        %s338 = scalar_select %p337, %s334, 1
        %s339 = smul.addr %s336, 2
        %s340 = sadd.s32 %s338, %s339
        %s341 = scalar_lea.vmem %s6, %s340
        %p342 = pneg %p219
        %p343 = pneg %p216
        %p344 = pneg %p240
        %p345 = pneg %p237
        %s346 = smul.u32 2, %s28
        %p347 = scmp.lt.s32.totalorder %s27, 1
        %s348 = scalar_select %p347, %s27, 1
        %p349 = scmp.lt.s32.totalorder %s346, 1
        %s350 = scalar_select %p349, %s346, 1
        %s351 = smul.addr %s348, 2
        %s352 = sadd.s32 %s350, %s351
        %s353 = smul.addr %s352, 4
        %s354 = scalar_lea.vmem %s0, %s353
        %s355 = smul.u32 2, %s28
        %s356 = smul.u32 2, %s28
        %p357 = scmp.lt.s32.totalorder %s27, 1
        %s358 = scalar_select %p357, %s27, 1
        %p359 = scmp.lt.s32.totalorder %s356, 1
        %s360 = scalar_select %p359, %s356, 1
        %s361 = smul.addr %s358, 2
        %s362 = sadd.s32 %s360, %s361
        %s363 = scalar_lea.vmem %s1, %s362
        %s364 = smul.u32 2, %s28
        %s365 = smul.u32 2, %s28
        %p366 = scmp.lt.s32.totalorder %s27, 1
        %s367 = scalar_select %p366, %s27, 1
        %p368 = scmp.lt.s32.totalorder %s365, 1
        %s369 = scalar_select %p368, %s365, 1
        %s370 = smul.addr %s367, 2
        %s371 = sadd.s32 %s369, %s370
        %s372 = scalar_lea.vmem %s6, %s371
        %s373 = smul.u32 2, %s28
        %p374 = scmp.eq.s32.totalorder %s27, 0
        %p375 = scmp.eq.s32.totalorder %s28, 0
        %p376 = pnand %p374, %p375
        %p377 = pneg %p376
        // Predicated region
        $region45: #{contrastive_full_model.1} parent=43 // pred_check
          _
        $region46: #{contrastive_full_model.1} parent=43 // pred_check_branch
          %379 = sbr.rel (%p376) target = $region48
        $region47: #{contrastive_full_model.1} parent=43 // pred_region
          %vm380 = vcmask 0
          %381 = vst.msk [vmem:[#allocation2] sm:$0x1] %vm380, 0.0
          %vm382 = vcmask 7168
          %383 = vst.msk [vmem:[#allocation3] sm:$0xff] %vm382, 0.0
          %384 = vst.msk [vmem:[#allocation3 + $0x8] sm:$0xff] %vm382, 0.0
          %385 = vst.msk [vmem:[#allocation3 + $0x10] sm:$0xff] %vm382, 0.0
          %386 = vst.msk [vmem:[#allocation3 + $0x18] sm:$0xff] %vm382, 0.0
          %387 = vst.msk [vmem:[#allocation4] sm:$0xff] %vm382, 0.0
          %388 = vst.msk [vmem:[#allocation4 + $0x8] sm:$0xff] %vm382, 0.0
          %389 = vst.msk [vmem:[#allocation4 + $0x10] sm:$0xff] %vm382, 0.0
          %390 = vst.msk [vmem:[#allocation4 + $0x18] sm:$0xff] %vm382, 0.0
        $region48: #{contrastive_full_model.1} parent=43 // pred_fallthru
          _
        %v391 = vld [vmem:[%s354] sm:$0xff]
        %v392 = vld [vmem:[%s2] sm:$0xff]
        %v393 = vld [vmem:[%s2 + $0x8] sm:$0xff]
        %v394 = vld [vmem:[%s2 + $0x10] sm:$0xff]
        %v395 = vld [vmem:[%s2 + $0x18] sm:$0xff]
        %v396 = vld [vmem:[%s3] sm:$0xff]
        %v397 = vld [vmem:[%s3 + $0x8] sm:$0xff]
        %v398 = vld [vmem:[%s3 + $0x10] sm:$0xff]
        %v399 = vld [vmem:[%s3 + $0x18] sm:$0xff]
        %401 = vset.pattern.permute.xlu0 0
        %402 = vperm.xlu0 %401, %v396
        %v403 = vpop.permute.xlu0 %402
        %406 = vset.pattern.permute.xlu0 0
        %407 = vperm.xlu0 %406, %v397
        %v408 = vpop.permute.xlu0 %407
        %411 = vset.pattern.permute.xlu0 0
        %412 = vperm.xlu0 %411, %v398
        %v413 = vpop.permute.xlu0 %412
        %416 = vset.pattern.permute.xlu0 0
        %417 = vperm.xlu0 %416, %v399
        %v418 = vpop.permute.xlu0 %417
        %421 = vst [vmem:[#allocation1] ss:$2 sm:$0xff] %v391
        %v422 = vld.sshfl [vmem:[#allocation1] sm:$0xff pattern:$0x75316420]
        %v423 = vld.sshfl [vmem:[#allocation1 + $0x8] sm:$0xff pattern:$0x75316420]
        %vm424 = vcmask 31744
        %v426 = vsel %vm424, %v392, 0
        %v429 = vsel %vm424, %v393, 0
        %v432 = vsel %vm424, %v394, 0
        %v435 = vsel %vm424, %v395, 0
        %vm437 = vcmask 1043456
        %v438 = vsel %vm437, %v422, 0
        %v440 = vsel %vm437, %v423, 0
        %442 = vmatpush.msra.mxu0 0.0
        %443 = vmatpush.msra.mxu0 0.0
        %444 = vmatpush.msra.mxu0 0.0
        %445 = vmatpush.msra.mxu0 0.0
        %446 = vmatpush.msra.mxu0 0.0
        %447 = vmatpush.msra.mxu0 0.0
        %448 = vmatpush.msra.mxu0 0.0
        %449 = vmatpush.msra.mxu0 0.0
        %450 = vmatpush.msra.mxu0 0.0
        %451 = vmatpush.msra.mxu0 0.0
        %452 = vmatpush.msra.mxu0 0.0
        %453 = vmatpush.msra.mxu0 0.0
        %454 = vmatpush.msra.mxu0 0.0
        %455 = vmatpush.msra.mxu0 0.0
        %456 = vmatpush.msra.mxu0 0.0
        %457 = vmatpush.msra.mxu0 %v438
        %458 = vmatmul.f32.gmra.mxu0 %v426
        %v459 = vpop.f32.mrf.mxu0
        %v460 = vadd.f32 %v403, %v459
        %461 = vmatmul.f32.gmra.mxu0 %v429
        %v462 = vpop.f32.mrf.mxu0
        %v463 = vadd.f32 %v408, %v462
        %464 = vmatmul.f32.gmra.mxu0 %v432
        %v465 = vpop.f32.mrf.mxu0
        %v466 = vadd.f32 %v413, %v465
        %467 = vmatmul.f32.gmra.mxu0 %v435
        %v468 = vpop.f32.mrf.mxu0
        %v469 = vadd.f32 %v418, %v468
        %470 = vdwg.mxu0
        %471 = vmatpush.msra.mxu0 0.0
        %472 = vmatpush.msra.mxu0 0.0
        %473 = vmatpush.msra.mxu0 0.0
        %474 = vmatpush.msra.mxu0 0.0
        %475 = vmatpush.msra.mxu0 0.0
        %476 = vmatpush.msra.mxu0 0.0
        %477 = vmatpush.msra.mxu0 0.0
        %478 = vmatpush.msra.mxu0 0.0
        %479 = vmatpush.msra.mxu0 0.0
        %480 = vmatpush.msra.mxu0 0.0
        %481 = vmatpush.msra.mxu0 0.0
        %482 = vmatpush.msra.mxu0 0.0
        %483 = vmatpush.msra.mxu0 0.0
        %484 = vmatpush.msra.mxu0 0.0
        %485 = vmatpush.msra.mxu0 0.0
        %486 = vmatpush.msra.mxu0 %v440
        %487 = vmatmul.f32.gmra.mxu0 %v426
        %v488 = vpop.f32.mrf.mxu0
        %v489 = vadd.f32 %v403, %v488
        %490 = vmatmul.f32.gmra.mxu0 %v429
        %v491 = vpop.f32.mrf.mxu0
        %v492 = vadd.f32 %v408, %v491
        %493 = vmatmul.f32.gmra.mxu0 %v432
        %v494 = vpop.f32.mrf.mxu0
        %v495 = vadd.f32 %v413, %v494
        %496 = vmatmul.f32.gmra.mxu0 %v435
        %v497 = vpop.f32.mrf.mxu0
        %v498 = vadd.f32 %v418, %v497
        %499 = vdwg.mxu0
        %v500 = vmax.f32 %v460, 0.0
        %v501 = vmax.f32 %v489, 0.0
        %v502 = vmax.f32 %v463, 0.0
        %v503 = vmax.f32 %v492, 0.0
        %v504 = vmax.f32 %v466, 0.0
        %v505 = vmax.f32 %v495, 0.0
        %v506 = vmax.f32 %v469, 0.0
        %v507 = vmax.f32 %v498, 0.0
        %v508 = vld [vmem:[%s4] sm:$0xff]
        %v509 = vld [vmem:[%s4 + $0x8] sm:$0xff]
        %v510 = vld [vmem:[%s4 + $0x10] sm:$0xff]
        %v511 = vld [vmem:[%s4 + $0x18] sm:$0xff]
        %513 = vset.pattern.permute.xlu0 0
        %514 = vperm.xlu0 %513, %v508
        %v515 = vpop.permute.xlu0 %514
        %518 = vset.pattern.permute.xlu0 0
        %519 = vperm.xlu0 %518, %v509
        %v520 = vpop.permute.xlu0 %519
        %523 = vset.pattern.permute.xlu0 0
        %524 = vperm.xlu0 %523, %v510
        %v525 = vpop.permute.xlu0 %524
        %528 = vset.pattern.permute.xlu0 0
        %529 = vperm.xlu0 %528, %v511
        %v530 = vpop.permute.xlu0 %529
        %v532 = vmul.f32 %v500, %v515
        %v533 = vmul.f32 %v501, %v515
        %v534 = vmul.f32 %v502, %v520
        %v535 = vmul.f32 %v503, %v520
        %v536 = vmul.f32 %v504, %v525
        %v537 = vmul.f32 %v505, %v525
        %v538 = vmul.f32 %v506, %v530
        %v539 = vmul.f32 %v507, %v530
        %v540 = vadd.f32 %v532, %v534
        %v541 = vadd.f32 %v540, %v536
        %v542 = vadd.f32 %v541, %v538
        %v543 = vrot.slane %v542, 4
        %v544 = vadd.f32 %v542, %v543
        %v545 = vrot.slane %v544, 2
        %v546 = vadd.f32 %v544, %v545
        %v547 = vrot.slane %v546, 1
        %v548 = vadd.f32 %v546, %v547
        %v549 = vadd.f32 %v533, %v535
        %v550 = vadd.f32 %v549, %v537
        %v551 = vadd.f32 %v550, %v539
        %v552 = vrot.slane %v551, 4
        %v553 = vadd.f32 %v551, %v552
        %v554 = vrot.slane %v553, 2
        %v555 = vadd.f32 %v553, %v554
        %v556 = vrot.slane %v555, 1
        %v557 = vadd.f32 %v555, %v556
        %s558 = sld [smem:[#allocation5]]
        %v559 = vstv %s558
        %v560 = vadd.f32 %v548, %v559
        %v561 = vadd.f32 %v557, %v559
        %v564 = vrot.slane %v561, 7
        %vm565 = vcmask 1040384
        %v566 = vsel %vm565, %v560, %v564
        %v568 = vlaneseq
        %vm569 = vcmp.ge.s32.totalorder %v568, 0
        %vm570 = vcmp.lt.s32.totalorder %v568, 256
        %vm571 = vmand %vm569, %vm570
        %572 = vst.msk [vmem:[%s372] sm:$0x3] %vm571, %v566
        %v573 = vld [vmem:[%s363] sm:$0x3]
        %v575 = vperm.slane %v573, 0
        %v576 = vperm.slane %v573, 1
        %v579 = vsub.f32 %v560, %v575
        %v580 = vsub.f32 %v561, %v576
        %v581 = vld [vmem:[#allocation2] sm:$0x1]
        %v582 = vmul.f32 %v579, %v579
        %v583 = vmul.f32 %v580, %v580
        %v584 = vsel %vm565, %v582, 0.0
        %v585 = vsel %vm565, %v583, 0.0
        %v586 = vadd.f32 %v584, %v585
        %587 = vadd.xlane.f32.xlu0 %v586
        %v588 = vpop.xlane.xlu0 %587
        %v589 = vrot.slane %v588, 4
        %v590 = vadd.f32 %v588, %v589
        %v591 = vrot.slane %v590, 2
        %v592 = vadd.f32 %v590, %v591
        %v593 = vrot.slane %v592, 1
        %v594 = vadd.f32 %v592, %v593
        %s595 = vtos %v594
        %v596 = vstv %s595
        %v597 = vadd.f32 %v581, %v596
        %vm598 = vcmask 0
        %599 = vst.msk [vmem:[#allocation2] sm:$0x1] %vm598, %v597
        %v600 = vadd.f32 %v500, %v501
        %601 = vadd.xlane.f32.xlu0 %v600
        %v602 = vpop.xlane.xlu0 %601
        %v603 = vadd.f32 %v502, %v503
        %604 = vadd.xlane.f32.xlu0 %v603
        %v605 = vpop.xlane.xlu0 %604
        %v606 = vadd.f32 %v504, %v505
        %607 = vadd.xlane.f32.xlu0 %v606
        %v608 = vpop.xlane.xlu0 %607
        %v609 = vadd.f32 %v506, %v507
        %610 = vadd.xlane.f32.xlu0 %v609
        %v611 = vpop.xlane.xlu0 %610
        %p612 = scmp.lt.s32.totalorder %s27, 1
        // Predicated region
        $region49: #{contrastive_full_model.1} parent=43 // pred_check
          %p613 = pneg %p612
        $region50: #{contrastive_full_model.1} parent=43 // pred_check_branch
          %615 = sbr.rel (%p613) target = $region52
        $region51: #{contrastive_full_model.1} parent=43 // pred_region
          %v616 = vld [vmem:[#allocation3] sm:$0xff]
          %v617 = vld [vmem:[#allocation3 + $0x8] sm:$0xff]
          %v618 = vld [vmem:[#allocation3 + $0x10] sm:$0xff]
          %v619 = vld [vmem:[#allocation3 + $0x18] sm:$0xff]
          %v620 = vadd.f32 %v616, %v602
          %v621 = vadd.f32 %v617, %v605
          %v622 = vadd.f32 %v618, %v608
          %v623 = vadd.f32 %v619, %v611
          %vm624 = vcmask 7168
          %625 = vst.msk [vmem:[#allocation3] sm:$0xff] %vm624, %v620
          %626 = vst.msk [vmem:[#allocation3 + $0x8] sm:$0xff] %vm624, %v621
          %627 = vst.msk [vmem:[#allocation3 + $0x10] sm:$0xff] %vm624, %v622
          %628 = vst.msk [vmem:[#allocation3 + $0x18] sm:$0xff] %vm624, %v623
        $region52: #{contrastive_full_model.1} parent=43 // pred_fallthru
          _
        %p629 = scmp.ge.s32.totalorder %s27, 1
        // Predicated region
        $region53: #{contrastive_full_model.1} parent=43 // pred_check
          %p630 = pneg %p629
        $region54: #{contrastive_full_model.1} parent=43 // pred_check_branch
          %632 = sbr.rel (%p630) target = $region56
        $region55: #{contrastive_full_model.1} parent=43 // pred_region
          %v633 = vld [vmem:[#allocation4] sm:$0xff]
          %v634 = vld [vmem:[#allocation4 + $0x8] sm:$0xff]
          %v635 = vld [vmem:[#allocation4 + $0x10] sm:$0xff]
          %v636 = vld [vmem:[#allocation4 + $0x18] sm:$0xff]
          %v637 = vadd.f32 %v633, %v602
          %v638 = vadd.f32 %v634, %v605
          %v639 = vadd.f32 %v635, %v608
          %v640 = vadd.f32 %v636, %v611
          %vm641 = vcmask 7168
          %642 = vst.msk [vmem:[#allocation4] sm:$0xff] %vm641, %v637
          %643 = vst.msk [vmem:[#allocation4 + $0x8] sm:$0xff] %vm641, %v638
          %644 = vst.msk [vmem:[#allocation4 + $0x10] sm:$0xff] %vm641, %v639
          %645 = vst.msk [vmem:[#allocation4 + $0x18] sm:$0xff] %vm641, %v640
        $region56: #{contrastive_full_model.1} parent=43 // pred_fallthru
          _
        %p646 = scmp.eq.s32.totalorder %s27, 1
        %p647 = pnand %p646, %p375
        %p648 = pneg %p647
        // Predicated region
        $region57: #{contrastive_full_model.1} parent=43 // pred_check
          _
        $region58: #{contrastive_full_model.1} parent=43 // pred_check_branch
          %650 = sbr.rel (%p647) target = $region60
        $region59: #{contrastive_full_model.1} parent=43 // pred_region
          %v651 = vld [vmem:[#allocation2] sm:$0x1]
          %v652 = vmul.f32 %v651, 0.001953125
          %653 = vst.msk [vmem:[#allocation6] sm:$0x1] %vm598, %v652
          %v654 = vld [vmem:[#allocation3] sm:$0xff]
          %v655 = vld [vmem:[#allocation3 + $0x8] sm:$0xff]
          %v656 = vld [vmem:[#allocation3 + $0x10] sm:$0xff]
          %v657 = vld [vmem:[#allocation3 + $0x18] sm:$0xff]
          %v658 = vmul.f32 %v654, 0.00390625
          %v659 = vmul.f32 %v655, 0.00390625
          %v660 = vmul.f32 %v656, 0.00390625
          %v661 = vmul.f32 %v657, 0.00390625
          %v662 = vld [vmem:[#allocation4] sm:$0xff]
          %v663 = vld [vmem:[#allocation4 + $0x8] sm:$0xff]
          %v664 = vld [vmem:[#allocation4 + $0x10] sm:$0xff]
          %v665 = vld [vmem:[#allocation4 + $0x18] sm:$0xff]
          %v666 = vmul.f32 %v662, 0.00390625
          %v667 = vmul.f32 %v663, 0.00390625
          %v668 = vmul.f32 %v664, 0.00390625
          %v669 = vmul.f32 %v665, 0.00390625
          %v670 = vmul.f32 %v658, %v658
          %v671 = vmul.f32 %v659, %v659
          %v672 = vmul.f32 %v660, %v660
          %v673 = vmul.f32 %v661, %v661
          %vm674 = vcmask 7168
          %v675 = vsel %vm674, %v670, 0.0
          %v676 = vsel %vm674, %v671, 0.0
          %v677 = vadd.f32 %v675, %v676
          %v678 = vsel %vm674, %v672, 0.0
          %v679 = vadd.f32 %v677, %v678
          %v680 = vsel %vm674, %v673, 0.0
          %v681 = vadd.f32 %v679, %v680
          %682 = vadd.xlane.f32.xlu0 %v681
          %v683 = vpop.xlane.xlu0 %682
          %v684 = vrot.slane %v683, 4
          %v685 = vadd.f32 %v683, %v684
          %v686 = vrot.slane %v685, 2
          %v687 = vadd.f32 %v685, %v686
          %v688 = vrot.slane %v687, 1
          %v689 = vadd.f32 %v687, %v688
          %s690 = vtos %v689
          %s691 = sadd.f32 %s690, 1e-08
          %v692 = vstv %s691
          %v693 = vrsqrt.pop %v692
          %v694 = vmul.f32 %v693, %v692
          %v695 = vmul.f32 %v694, %v693
          %v696 = vmul.f32 0.5, %v695
          %v697 = vsub.f32 1.5, %v696
          %v698 = vmul.f32 %v693, %v697
          %vm699 = vweird.f32 %v692
          %vm700 = vweird.f32 %v693
          %vm701 = vmor %vm699, %vm700
          %v702 = vsel %vm701, %v693, %v698
          %s703 = vtos %v702
          %v704 = vstv %s703
          %v705 = vmul.f32 %v658, %v704
          %v706 = vmul.f32 %v659, %v704
          %v707 = vmul.f32 %v660, %v704
          %v708 = vmul.f32 %v661, %v704
          %v709 = vmul.f32 %v666, %v666
          %v710 = vmul.f32 %v667, %v667
          %v711 = vmul.f32 %v668, %v668
          %v712 = vmul.f32 %v669, %v669
          %v713 = vsel %vm674, %v709, 0.0
          %v714 = vsel %vm674, %v710, 0.0
          %v715 = vadd.f32 %v713, %v714
          %v716 = vsel %vm674, %v711, 0.0
          %v717 = vadd.f32 %v715, %v716
          %v718 = vsel %vm674, %v712, 0.0
          %v719 = vadd.f32 %v717, %v718
          %720 = vadd.xlane.f32.xlu0 %v719
          %v721 = vpop.xlane.xlu0 %720
          %v722 = vrot.slane %v721, 4
          %v723 = vadd.f32 %v721, %v722
          %v724 = vrot.slane %v723, 2
          %v725 = vadd.f32 %v723, %v724
          %v726 = vrot.slane %v725, 1
          %v727 = vadd.f32 %v725, %v726
          %s728 = vtos %v727
          %s729 = sadd.f32 %s728, 1e-08
          %v730 = vstv %s729
          %v731 = vrsqrt.pop %v730
          %v732 = vmul.f32 %v731, %v730
          %v733 = vmul.f32 %v732, %v731
          %v734 = vmul.f32 0.5, %v733
          %v735 = vsub.f32 1.5, %v734
          %v736 = vmul.f32 %v731, %v735
          %vm737 = vweird.f32 %v730
          %vm738 = vweird.f32 %v731
          %vm739 = vmor %vm737, %vm738
          %v740 = vsel %vm739, %v731, %v736
          %s741 = vtos %v740
          %v742 = vstv %s741
          %v743 = vmul.f32 %v666, %v742
          %v744 = vmul.f32 %v667, %v742
          %v745 = vmul.f32 %v668, %v742
          %v746 = vmul.f32 %v669, %v742
          %v747 = vmul.f32 %v705, %v743
          %v748 = vmul.f32 %v706, %v744
          %v749 = vmul.f32 %v707, %v745
          %v750 = vmul.f32 %v708, %v746
          %v751 = vsel %vm674, %v747, 0.0
          %v752 = vsel %vm674, %v748, 0.0
          %v753 = vadd.f32 %v751, %v752
          %v754 = vsel %vm674, %v749, 0.0
          %v755 = vadd.f32 %v753, %v754
          %v756 = vsel %vm674, %v750, 0.0
          %v757 = vadd.f32 %v755, %v756
          %758 = vadd.xlane.f32.xlu0 %v757
          %v759 = vpop.xlane.xlu0 %758
          %v760 = vrot.slane %v759, 4
          %v761 = vadd.f32 %v759, %v760
          %v762 = vrot.slane %v761, 2
          %v763 = vadd.f32 %v761, %v762
          %v764 = vrot.slane %v763, 1
          %v765 = vadd.f32 %v763, %v764
          %s766 = vtos %v765
          %v767 = vstv %s766
          %v768 = vsub.f32 1.0, %v767
          %769 = vst.msk [vmem:[#allocation8] sm:$0x1] %vm598, %v768
        $region60: #{contrastive_full_model.1} parent=43 // pred_fallthru
          _
        %s770 = smul.u32 2, %s28
        %p771 = scmp.lt.s32.totalorder %s27, 1
        %s772 = scalar_select %p771, %s27, 1
        %p773 = scmp.lt.s32.totalorder %s770, 1
        %s774 = scalar_select %p773, %s770, 1
        %s775 = smul.addr %s772, 2
        %s776 = sadd.s32 %s774, %s775
        %s777 = scalar_lea.vmem %s6, %s776
        // Predicated region
        $region61: #{contrastive_full_model.1} parent=43 // pred_check
          %p778 = pneg %p195
        $region62: #{contrastive_full_model.1} parent=43 // pred_check_branch
          %780 = sbr.rel (%p778) target = $region64
        $region63: #{contrastive_full_model.1} parent=43 // pred_region
          %s781 = smul.u32 2, %s28
        $region64: #{contrastive_full_model.1} parent=43 // pred_fallthru
          _
        // Predicated region
        $region65: #{contrastive_full_model.1} parent=43 // pred_check
          %p782 = pneg %p216
        $region66: #{contrastive_full_model.1} parent=43 // pred_check_branch
          %784 = sbr.rel (%p782) target = $region68
        $region67: #{contrastive_full_model.1} parent=43 // pred_region
          %786 = vsyncadd [#allocation7], 0
          %s788 = sshll.u32 [#allocation6], 4
          %s789 = int_to_ptr.vmem [resolvable:$true] %s788
          %s790 = sshll.u32 %s7, 4
          %s791 = int_to_ptr.hbm [resolvable:$true] %s790
          %793 = dma.vmem_to_hbm [thread:$0]  %s789, 16, %s791, [#allocation7]
        $region68: #{contrastive_full_model.1} parent=43 // pred_fallthru
          _
        // Predicated region
        $region69: #{contrastive_full_model.1} parent=43 // pred_check
          %p794 = pneg %p237
        $region70: #{contrastive_full_model.1} parent=43 // pred_check_branch
          %796 = sbr.rel (%p794) target = $region72
        $region71: #{contrastive_full_model.1} parent=43 // pred_region
          %798 = vsyncadd [#allocation9], 0
          %s800 = sshll.u32 [#allocation8], 4
          %s801 = int_to_ptr.vmem [resolvable:$true] %s800
          %s802 = sshll.u32 %s8, 4
          %s803 = int_to_ptr.hbm [resolvable:$true] %s802
          %805 = dma.vmem_to_hbm [thread:$0]  %s801, 16, %s803, [#allocation9]
        $region72: #{contrastive_full_model.1} parent=43 // pred_fallthru
          _
        // Predicated region
        $region73: #{contrastive_full_model.1} parent=43 // pred_check
          %p806 = pneg %p216
        $region74: #{contrastive_full_model.1} parent=43 // pred_check_branch
          %808 = sbr.rel (%p806) target = $region76
        $region75: #{contrastive_full_model.1} parent=43 // pred_region
          %810 = dma.done [#allocation7], 16
        $region76: #{contrastive_full_model.1} parent=43 // pred_fallthru
          _
        // Predicated region
        $region77: #{contrastive_full_model.1} parent=43 // pred_check
          %p811 = pneg %p237
        $region78: #{contrastive_full_model.1} parent=43 // pred_check_branch
          %813 = sbr.rel (%p811) target = $region80
        $region79: #{contrastive_full_model.1} parent=43 // pred_region
          %815 = dma.done [#allocation9], 16
        $region80: #{contrastive_full_model.1} parent=43 // pred_fallthru
          _
      $region44: #{contrastive_full_model.1} parent=5 // pred_fallthru
        _
      %p816 = scmp.le.s32.totalorder 2, %s18
      // Predicated region
      $region81: #{contrastive_full_model.1} parent=5 // pred_check
        %p817 = pneg %p816
      $region82: #{contrastive_full_model.1} parent=5 // pred_check_branch
        %819 = sbr.rel (%p817) target = $region84
      $region83: #{contrastive_full_model.1} parent=5 // pred_region
        %s820 = ssub.s32 %s18, 2
        // Predicated region
        $region85: #{contrastive_full_model.1} parent=83 // pred_check
          %p821 = pneg %p201
        $region86: #{contrastive_full_model.1} parent=83 // pred_check_branch
          %823 = sbr.rel (%p821) target = $region88
        $region87: #{contrastive_full_model.1} parent=83 // pred_region
          %s824 = smul.u32 2, %s30
          %p825 = scmp.lt.s32.totalorder %s29, 1
          %s826 = scalar_select %p825, %s29, 1
          %p827 = scmp.lt.s32.totalorder %s824, 1
          %s828 = scalar_select %p827, %s824, 1
          %s829 = smul.addr %s826, 2
          %s830 = sadd.s32 %s828, %s829
          %s831 = scalar_lea.vmem %s6, %s830
        $region88: #{contrastive_full_model.1} parent=83 // pred_fallthru
          _
      $region84: #{contrastive_full_model.1} parent=5 // pred_fallthru
        _
    $region6: #{contrastive_full_model.1} parent=1 // loop_footer
      %s22 = sadd.s32 1, %s18
    $region7: #{contrastive_full_model.1} parent=1 // loop_footer_branch
      %17 = sbr.rel target = $region3
    $region8: #{contrastive_full_model.1} parent=1 // loop_exit
      _
    %832 = vsyncpa [#allocation7], 1
    %s833 = scalar_lea.sflag [#allocation7], 1
    %834 = vsyncpa %s833, 1
    %835 = vsyncpa [#allocation9], 1

</llo_original>
